<compile_context>
chip_gen: v5e
topology: v5e:2x2
jax: 0.10.0
libtpu: 0.0.40
codegen_flags: <defaults>
</compile_context>

<pallas_src>
import functools

import jax
import jax.numpy as jnp
from jax.experimental import pallas as pl
from jax.experimental.pallas import tpu as pltpu


def _round_up(x, m):
    return ((x + m - 1) // m) * m


def _cdiv(a, b):
    return -(-a // b)


def _chip_config():
    """Per-TPU-generation VMEM limit / sizing budget / math flags."""
    kind = ""
    try:
        devs = jax.devices()
        if devs:
            kind = devs[0].device_kind.lower()
    except Exception:
        pass
    if "v5 lite" in kind or "v5lite" in kind or "v5e" in kind:
        # v5e: 128 MiB physical, 16 MiB scoped default -> raise it; f32 VPU/EUP only.
        return dict(vmem_limit=64 << 20, budget=56 << 20, target_rows=128, bf16_eup=False)
    if "v6" in kind:
        # v6e: 128 MiB physical, 32 MiB scoped default.
        return dict(vmem_limit=100 << 20, budget=88 << 20, target_rows=256, bf16_eup=True)
    if "v7" in kind or "tpu7" in kind:
        # v7x: only 64 MiB physical -> leave double-buffering headroom.
        return dict(vmem_limit=52 << 20, budget=44 << 20, target_rows=256, bf16_eup=True)
    if "v5" in kind:  # v5p
        return dict(vmem_limit=64 << 20, budget=56 << 20, target_rows=256, bf16_eup=False)
    if "v4" in kind:
        return dict(vmem_limit=64 << 20, budget=56 << 20, target_rows=256, bf16_eup=False)
    # Unknown / older chip: conservative sizing, no explicit limit override.
    return dict(vmem_limit=None, budget=8 << 20, target_rows=128, bf16_eup=False)


def _attention_kernel(hp_ref, enc_ref, we_ref, v_ref, mask_ref, out_ref, sbuf_ref,
                      *, s_valid, tanh_dtype, approx):
    # Per-grid-step views (BB batch rows per step):
    #   hp_ref  : (1, BB, 1, H)    f32        hidden @ W_h + b (hoisted to wrapper)
    #   enc_ref : (1, BB, S8, 2H)  bf16/f32   batch-major encoder outputs
    #   we_ref  : (2H, H)          bf16/f32   encoder half of the attn weight
    #   v_ref   : (1, H)           f32
    #   mask_ref: (1, BB, S128)    int32      0 => masked (S-padding is 0 too)
    #   out_ref : (1, BB, S128)    f32        softmax attention weights (lane-dense)
    #   sbuf_ref: (BB, S128)       f32        scratch to widen scores lane-dense
    _, BB, S8, twoH = enc_ref.shape
    H = we_ref.shape[1]
    S128 = mask_ref.shape[2]

    # One MXU matmul per grid step: (BB*S8, 2H) @ (2H, H), f32 accumulation.
    enc2 = enc_ref[0].reshape(BB * S8, twoH)      # tile-aligned merge (S8 % 8 == 0)
    enc_proj = jnp.dot(enc2, we_ref[...], preferred_element_type=jnp.float32)

    # energy = tanh(hid @ W_h + enc @ W_e + b); hidden part + bias precomputed.
    energy = enc_proj.reshape(BB, S8, H) + hp_ref[0]            # (BB, S8, H) f32
    energy = jnp.tanh(energy.astype(tanh_dtype))                # bf16 EUP on v6e/v7x

    # scores = v . energy (contract over H) -> (BB, S8), f32.
    scores = jnp.sum(energy.astype(jnp.float32) * v_ref[...], axis=-1)

    # Widen to the lane-dense (BB, S128) frame via plain slice store / load.
    if S8 != S128:
        sbuf_ref[:, :S8] = scores
        scores = sbuf_ref[...]          # padded columns hold don't-cares (overridden)

    # masked_fill(mask == 0, -1e10); padding columns (>= real S) are forced to
    # -inf so they contribute exactly 0 and the fully-masked-row case matches torch.
    scores = jnp.where(mask_ref[0] == 0, jnp.float32(-1e10), scores)
    if s_valid != S128:
        col = jax.lax.broadcasted_iota(jnp.int32, scores.shape, 1)
        scores = jnp.where(col < s_valid, scores, -jnp.inf)

    # softmax over S (f32 throughout).
    mx = jnp.max(scores, axis=-1, keepdims=True)
    e = jnp.exp(scores - mx)
    denom = jnp.sum(e, axis=-1, keepdims=True)
    # approx reciprocal = free EUP slot in production mode; exact in verify mode.
    out_ref[0] = (e * pl.reciprocal(denom, approx=approx)).astype(out_ref.dtype)


def _pick_block_b(batch, s8, s128, two_h, h, enc_bytes, budget, target_rows):
    """Largest BB that fits the VMEM budget, capped by the MXU row target and B."""
    per_bb = (2 * s8 * two_h * enc_bytes   # encoder block (double-buffered)
              + 2 * s128 * 4               # output block (f32)
              + 2 * s128 * 4               # mask block (int32)
              + 2 * h * 4                  # hidden-projection block (f32)
              + s128 * 4)                  # scores-widening scratch
    fixed = 2 * two_h * h * enc_bytes + 2 * h * 4   # W_e + v blocks
    bb_budget = max(1, (budget - fixed) // per_bb)
    bb_target = max(1, _cdiv(target_rows, s8))      # aim for >= target MXU rows / step
    return int(max(1, min(bb_budget, bb_target, batch)))


def attention_forward(hidden, encoder_outputs, mask, W, b, v, *,
                      compute_dtype=jnp.bfloat16, block_b=None):
    """hidden: (B, 2H); encoder_outputs: (S, B, 2H); mask: (B, S);
       W: (H, 4H); b: (H,); v: (H,).  Returns (B, S) softmax weights (f32)."""
    S, B, twoH = encoder_outputs.shape
    H = W.shape[0]
    assert twoH == 2 * H and W.shape[1] == 4 * H

    cfg = _chip_config()
    compute_dtype = jnp.dtype(compute_dtype)
    is_bf16 = compute_dtype == jnp.dtype(jnp.bfloat16)
    enc_bytes = compute_dtype.itemsize

    s8 = _round_up(S, 8)       # sublane-aligned enc block: free in-kernel reshapes
    s128 = _round_up(S, 128)   # lane-dense mask / output blocks

    if block_b is None:
        block_b = _pick_block_b(B, s8, s128, twoH, H, enc_bytes,
                                cfg["budget"], cfg["target_rows"])
        grid_b = _cdiv(B, block_b)
        # Best-effort: keep >1-step grids even so both v7x TensorCores balance.
        if grid_b > 1 and grid_b % 2 == 1:
            grid_b += 1
            block_b = _cdiv(B, grid_b)
            grid_b = _cdiv(B, block_b)
    else:
        grid_b = _cdiv(B, block_b)
    b_pad = grid_b * block_b

    f32 = jnp.float32
    wh = W[:, :twoH].T.astype(f32)              # (2H, H) hidden half (kept f32)
    we = W[:, twoH:].T.astype(compute_dtype)    # (2H, H) encoder half (bf16 in prod)

    # Hoisted hidden projection (+ bias): one (B,2H)@(2H,H) matmul in f32.
    hp = jnp.dot(hidden.astype(f32), wh, precision=jax.lax.Precision.HIGHEST)
    hp = hp + b.astype(f32)
    hp = jnp.pad(hp, ((0, b_pad - B), (0, 0))).reshape(grid_b, block_b, 1, H)

    # Batch-major encoder outputs, materialized so the dominant enc DMA reads
    # contiguous slabs (fused strided transpose loses for small 2H chunks).
    enc_r = jnp.transpose(encoder_outputs, (1, 0, 2)).astype(compute_dtype)
    enc_r = jnp.pad(enc_r, ((0, b_pad - B), (0, s8 - S), (0, 0)))
    enc_r = enc_r.reshape(grid_b, block_b, s8, twoH)

    mask_r = jnp.pad(mask.astype(jnp.int32), ((0, b_pad - B), (0, s128 - S)))
    mask_r = mask_r.reshape(grid_b, block_b, s128)

    v2 = v.reshape(1, H).astype(f32)

    tanh_dtype = jnp.bfloat16 if (is_bf16 and cfg["bf16_eup"]) else jnp.float32
    approx = is_bf16   # exact reciprocal in f32 / verification mode

    kernel = functools.partial(_attention_kernel, s_valid=S,
                               tanh_dtype=tanh_dtype, approx=approx)

    out = pl.pallas_call(
        kernel,
        out_shape=jax.ShapeDtypeStruct((grid_b, block_b, s128), f32),
        grid=(grid_b,),
        in_specs=[
            pl.BlockSpec((1, block_b, 1, H), lambda i: (i, 0, 0, 0)),      # hid proj + b
            pl.BlockSpec((1, block_b, s8, twoH), lambda i: (i, 0, 0, 0)),  # encoder outputs
            pl.BlockSpec((twoH, H), lambda i: (0, 0)),                     # W_e
            pl.BlockSpec((1, H), lambda i: (0, 0)),                        # v
            pl.BlockSpec((1, block_b, s128), lambda i: (i, 0, 0)),         # mask
        ],
        out_specs=pl.BlockSpec((1, block_b, s128), lambda i: (i, 0, 0)),
        scratch_shapes=[pltpu.VMEM((block_b, s128), f32)],
        compiler_params=pltpu.CompilerParams(
            dimension_semantics=("parallel",),
            vmem_limit_bytes=cfg["vmem_limit"]),
    )(hp, enc_r, we, v2, mask_r)

    return out.reshape(b_pad, s128)[:B, :S]


def _reference(hidden, encoder_outputs, mask, W, b, v):
    """Pure-JAX mirror of the PyTorch forward, for verification."""
    S = encoder_outputs.shape[0]
    hid = jnp.repeat(hidden[:, None, :], S, axis=1)            # (B, S, 2H)
    enc = jnp.transpose(encoder_outputs, (1, 0, 2))            # (B, S, 2H)
    cat = jnp.concatenate([hid, enc], axis=2)                  # (B, S, 4H)
    energy = jnp.tanh(
        jnp.einsum("bsi,hi->bsh", cat, W, precision=jax.lax.Precision.HIGHEST) + b)
    scores = jnp.einsum("h,bsh->bs", v, energy, precision=jax.lax.Precision.HIGHEST)
    scores = jnp.where(mask == 0, -1e10, scores)
    return jax.nn.softmax(scores, axis=1)


if __name__ == "__main__":
    H = 32    # hidden_size
    B = 4     # batch
    S = 10    # src_len (not a multiple of 8 / 128: exercises both padding paths)

    key = jax.random.PRNGKey(0)
    k1, k2, k3, k4, k5, k6 = jax.random.split(key, 6)

    # Parameters (shapes from nn.Linear(4H, H) and v ~ rand(H)).
    W = jax.random.uniform(k1, (H, 4 * H), jnp.float32, -0.1, 0.1)
    b = jax.random.uniform(k2, (H,), jnp.float32, -0.1, 0.1)
    v = jax.random.uniform(k3, (H,), jnp.float32, 0.0, 1.0)

    # Inputs.
    hidden = jax.random.normal(k4, (B, 2 * H), jnp.float32)
    encoder_outputs = jax.random.normal(k5, (S, B, 2 * H), jnp.float32)
    mask = (jax.random.uniform(k6, (B, S)) > 0.3).astype(jnp.int32)
    mask = mask.at[:, 0].set(1)   # at least one valid position per row

    ref = _reference(hidden, encoder_outputs, mask, W, b, v)

    # Verification mode: f32 compute path, exact reciprocal.
    out_f32 = jax.block_until_ready(
        attention_forward(hidden, encoder_outputs, mask, W, b, v,
                          compute_dtype=jnp.float32))
    # Production mode (default): bf16 enc / W_e path, approx reciprocal.
    out_bf16 = jax.block_until_ready(
        attention_forward(hidden, encoder_outputs, mask, W, b, v))

    assert out_f32.shape == (B, S) and out_bf16.shape == (B, S)
    assert bool(jnp.allclose(jnp.sum(out_f32, axis=1), 1.0, atol=1e-3))
    # Tolerances account for MXU bf16-pass rounding of the dominant matmul.
    err32 = float(jnp.max(jnp.abs(out_f32 - ref)))
    errbf = float(jnp.max(jnp.abs(out_bf16 - ref)))
    assert err32 < 1e-2, f"f32 path max abs diff = {err32}"
    assert errbf < 3e-2, f"bf16 path max abs diff = {errbf}"
    print("KERNEL_OK")
</pallas_src>

<mosaic_0001>
module attributes {stable_mosaic.version = 11 : i64} {
  func.func @_attention_kernel(%arg0: i32, %arg1: memref<1x4x1x32xf32, #tpu.memory_space<vmem>>, %arg2: memref<1x4x16x64xf32, #tpu.memory_space<vmem>>, %arg3: memref<64x32xf32, #tpu.memory_space<vmem>>, %arg4: memref<1x32xf32, #tpu.memory_space<vmem>>, %arg5: memref<1x4x128xi32, #tpu.memory_space<vmem>>, %arg6: memref<1x4x128xf32, #tpu.memory_space<vmem>>, %arg7: memref<4x128xf32, #tpu.memory_space<vmem>>) attributes {dimension_semantics = [#tpu.dimension_semantics<parallel>], iteration_bounds = array<i64: 1>, scalar_prefetch = 0 : i64, scratch_operands = 1 : i64, tpu.core_type = #tpu.core_type<tc>, window_params = [{transform_indices = @transform_0, window_bounds = array<i64: 1, 4, 1, 32>}, {transform_indices = @transform_1, window_bounds = array<i64: 1, 4, 16, 64>}, {pipeline_mode = #tpu.pipeline_mode<synchronous>, transform_indices = @transform_2, window_bounds = array<i64: 64, 32>}, {pipeline_mode = #tpu.pipeline_mode<synchronous>, transform_indices = @transform_3, window_bounds = array<i64: 1, 32>}, {transform_indices = @transform_4, window_bounds = array<i64: 1, 4, 128>}, {transform_indices = @transform_5, window_bounds = array<i64: 1, 4, 128>}]} {
    %c0 = arith.constant 0 : index
    %c0_0 = arith.constant 0 : index
    %c0_1 = arith.constant 0 : index
    %c0_2 = arith.constant 0 : index
    %0 = vector.load %arg2[%c0, %c0_0, %c0_1, %c0_2] : memref<1x4x16x64xf32, #tpu.memory_space<vmem>>, vector<1x4x16x64xf32>
    %1 = vector.shape_cast %0 : vector<1x4x16x64xf32> to vector<4x16x64xf32>
    %2 = vector.shape_cast %1 : vector<4x16x64xf32> to vector<64x64xf32>
    %c0_3 = arith.constant 0 : index
    %c0_4 = arith.constant 0 : index
    %3 = vector.load %arg3[%c0_3, %c0_4] : memref<64x32xf32, #tpu.memory_space<vmem>>, vector<64x32xf32>
    %cst = arith.constant dense<0.000000e+00> : vector<64x32xf32>
    %4 = tpu.matmul %2, %3, %cst {dimension_numbers = #tpu.dot_dimension_numbers<[1], [0], [0], [1], [0, 0, 1, 1], [], []>} : vector<64x64xf32>, vector<64x32xf32>, vector<64x32xf32> -> vector<64x32xf32>
    %5 = vector.shape_cast %4 : vector<64x32xf32> to vector<4x16x32xf32>
    %c0_5 = arith.constant 0 : index
    %c0_6 = arith.constant 0 : index
    %c0_7 = arith.constant 0 : index
    %c0_8 = arith.constant 0 : index
    %6 = vector.load %arg1[%c0_5, %c0_6, %c0_7, %c0_8] : memref<1x4x1x32xf32, #tpu.memory_space<vmem>>, vector<1x4x1x32xf32>
    %7 = vector.shape_cast %6 : vector<1x4x1x32xf32> to vector<4x1x32xf32>
    %8 = vector.broadcast %7 : vector<4x1x32xf32> to vector<4x16x32xf32>
    %9 = arith.addf %5, %8 : vector<4x16x32xf32>
    %10 = math.tanh %9 : vector<4x16x32xf32>
    %c0_9 = arith.constant 0 : index
    %c0_10 = arith.constant 0 : index
    %11 = vector.load %arg4[%c0_9, %c0_10] : memref<1x32xf32, #tpu.memory_space<vmem>>, vector<1x32xf32>
    %12 = vector.shape_cast %11 : vector<1x32xf32> to vector<1x1x32xf32>
    %13 = vector.broadcast %12 : vector<1x1x32xf32> to vector<4x16x32xf32>
    %14 = arith.mulf %10, %13 : vector<4x16x32xf32>
    %cst_11 = arith.constant dense<0.000000e+00> : vector<4x16xf32>
    %15 = vector.multi_reduction <add>, %14, %cst_11 [2] : vector<4x16x32xf32> to vector<4x16xf32>
    %c0_12 = arith.constant 0 : index
    %c0_13 = arith.constant 0 : index
    %16 = vector.load %arg7[%c0_12, %c0_13] : memref<4x128xf32, #tpu.memory_space<vmem>>, vector<4x16xf32>
    tpu.vector_store %arg7[%c0_12, %c0_13], %15 {strides = array<i32>} : memref<4x128xf32, #tpu.memory_space<vmem>>, vector<4x16xf32>,
    %c0_14 = arith.constant 0 : index
    %c0_15 = arith.constant 0 : index
    %17 = vector.load %arg7[%c0_14, %c0_15] : memref<4x128xf32, #tpu.memory_space<vmem>>, vector<4x128xf32>
    %c0_16 = arith.constant 0 : index
    %c0_17 = arith.constant 0 : index
    %c0_18 = arith.constant 0 : index
    %18 = vector.load %arg5[%c0_16, %c0_17, %c0_18] : memref<1x4x128xi32, #tpu.memory_space<vmem>>, vector<1x4x128xi32>
    %19 = vector.shape_cast %18 : vector<1x4x128xi32> to vector<4x128xi32>
    %c0_i32 = arith.constant 0 : i32
    %20 = vector.broadcast %c0_i32 : i32 to vector<4x128xi32>
    %21 = arith.cmpi eq, %19, %20 : vector<4x128xi32>
    %cst_19 = arith.constant -1.000000e+10 : f32
    %22 = vector.broadcast %cst_19 : f32 to vector<4x128xf32>
    %23 = arith.select %21, %22, %17 : vector<4x128xi1>, vector<4x128xf32>
    %24 = tpu.iota {dimensions = array<i32: 1>} : vector<4x128xi32>
    %c10_i32 = arith.constant 10 : i32
    %25 = vector.broadcast %c10_i32 : i32 to vector<4x128xi32>
    %26 = arith.cmpi slt, %24, %25 : vector<4x128xi32>
    %cst_20 = arith.constant 0xFF800000 : f32
    %27 = vector.broadcast %cst_20 : f32 to vector<4x128xf32>
    %28 = arith.select %26, %23, %27 : vector<4x128xi1>, vector<4x128xf32>
    %cst_21 = arith.constant dense<0xFF800000> : vector<4xf32>
    %29 = vector.multi_reduction <maximumf>, %28, %cst_21 [1] : vector<4x128xf32> to vector<4xf32>
    %30 = vector.shape_cast %29 : vector<4xf32> to vector<4x1xf32>
    %31 = vector.broadcast %30 : vector<4x1xf32> to vector<4x128xf32>
    %32 = arith.subf %28, %31 : vector<4x128xf32>
    %33 = math.exp %32 : vector<4x128xf32>
    %cst_22 = arith.constant dense<0.000000e+00> : vector<4xf32>
    %34 = vector.multi_reduction <add>, %33, %cst_22 [1] : vector<4x128xf32> to vector<4xf32>
    %35 = vector.shape_cast %34 : vector<4xf32> to vector<4x1xf32>
    %36 = tpu.reciprocal %35 : vector<4x1xf32> -> vector<4x1xf32>
    %37 = vector.broadcast %36 : vector<4x1xf32> to vector<4x128xf32>
    %38 = arith.mulf %33, %37 : vector<4x128xf32>
    %c0_23 = arith.constant 0 : index
    %c0_24 = arith.constant 0 : index
    %c0_25 = arith.constant 0 : index
    %39 = vector.load %arg6[%c0_23, %c0_24, %c0_25] : memref<1x4x128xf32, #tpu.memory_space<vmem>>, vector<1x4x128xf32>
    %40 = vector.shape_cast %39 : vector<1x4x128xf32> to vector<4x128xf32>
    %41 = vector.shape_cast %38 : vector<4x128xf32> to vector<1x4x128xf32>
    tpu.vector_store %arg6[%c0_23, %c0_24, %c0_25], %41 {strides = array<i32>} : memref<1x4x128xf32, #tpu.memory_space<vmem>>, vector<1x4x128xf32>,
    return
  }
  func.func @transform_0(%arg0: i32) -> (i32, i32, i32, i32) {
    %c0_i32 = arith.constant 0 : i32
    %c0_i32_0 = arith.constant 0 : i32
    %c0_i32_1 = arith.constant 0 : i32
    %c0_i32_2 = arith.constant 0 : i32
    return %arg0, %c0_i32, %c0_i32_0, %c0_i32_1 : i32, i32, i32, i32
  }
  func.func @transform_1(%arg0: i32) -> (i32, i32, i32, i32) {
    %c0_i32 = arith.constant 0 : i32
    %c0_i32_0 = arith.constant 0 : i32
    %c0_i32_1 = arith.constant 0 : i32
    %c0_i32_2 = arith.constant 0 : i32
    return %arg0, %c0_i32, %c0_i32_0, %c0_i32_1 : i32, i32, i32, i32
  }
  func.func @transform_2(%arg0: i32) -> (i32, i32) {
    %c0_i32 = arith.constant 0 : i32
    %c0_i32_0 = arith.constant 0 : i32
    %c0_i32_1 = arith.constant 0 : i32
    return %c0_i32, %c0_i32_0 : i32, i32
  }
  func.func @transform_3(%arg0: i32) -> (i32, i32) {
    %c0_i32 = arith.constant 0 : i32
    %c0_i32_0 = arith.constant 0 : i32
    %c0_i32_1 = arith.constant 0 : i32
    return %c0_i32, %c0_i32_0 : i32, i32
  }
  func.func @transform_4(%arg0: i32) -> (i32, i32, i32) {
    %c0_i32 = arith.constant 0 : i32
    %c0_i32_0 = arith.constant 0 : i32
    %c0_i32_1 = arith.constant 0 : i32
    return %arg0, %c0_i32, %c0_i32_0 : i32, i32, i32
  }
  func.func @transform_5(%arg0: i32) -> (i32, i32, i32) {
    %c0_i32 = arith.constant 0 : i32
    %c0_i32_0 = arith.constant 0 : i32
    %c0_i32_1 = arith.constant 0 : i32
    return %arg0, %c0_i32, %c0_i32_0 : i32, i32, i32
  }
}

</mosaic_0001>

<llo_original>
// kernel: tpu_custom_call.1
$region0: #{tpu_custom_call.1}
  #allocation0 [shape = 'u32[]', space=smem, size = 0x4, offset = 0x4, fixed_abs, tag = 'smem constant byte address 0x4 - core index']
  #allocation1 [shape = 'u32[72,128]{1,0:T(1,128)}', space=vmem, size = 0x9000, scoped, tag = 'internal scratch']
  #allocation2 [shape = 'f32[4,128]{1,0:T(4,128)}', space=vmem, size = 0x800, scoped, tag = 'scratch operand']
  %s0 = inlined_call_operand.vmem [shape: f32[1,4,1,32], index: 0, kind: input, shape index: {}]
  %s1 = inlined_call_operand.vmem [shape: f32[1,4,16,64], index: 1, kind: input, shape index: {}]
  %s2 = inlined_call_operand.vmem [shape: f32[64,32], index: 2, kind: input, shape index: {}]
  %s3 = inlined_call_operand.vmem [shape: f32[1,32], index: 3, kind: input, shape index: {}]
  %s4 = inlined_call_operand.vmem [shape: s32[1,4,128], index: 4, kind: input, shape index: {}]
  %s5 = inlined_call_operand.hbm [shape: f32[1,4,128], index: 5, kind: output, shape index: {}]
  %s6 = sld [smem:[#allocation0]]
  $region30: #{tpu_custom_call.1} parent=0
    _
  %s8 = ssub.s32 1, %s6
  %s9 = scalar_select 0, %s8, %s6
  $region1: #{tpu_custom_call.1} parent=0
    #allocation3 [shape = 'u8[2048]{0}', space=vmem, size = 0x800, scoped, tag = 'output window, operand 0, single buffered']
    #allocation4 [shape = 's32[1]{0}', space=sflag, size = 0x4, scoped, tag = 'scoped memory for tpu_custom_call.1']
    %10 = vsyncpa [#allocation4], 0
    // Predicated region
    $region2: #{tpu_custom_call.1} parent=1 // pred_check
      _
    $region3: #{tpu_custom_call.1} parent=1 // pred_check_branch
      %12 = sbr.rel (0) target = $region5
    $region4: #{tpu_custom_call.1} parent=1 // pred_region
      _
    $region5: #{tpu_custom_call.1} parent=1 // pred_fallthru
      _
    // Predicated region
    $region6: #{tpu_custom_call.1} parent=1 // pred_check
      _
    $region7: #{tpu_custom_call.1} parent=1 // pred_check_branch
      %14 = sbr.rel (0) target = $region9
    $region8: #{tpu_custom_call.1} parent=1 // pred_region
      _
    $region9: #{tpu_custom_call.1} parent=1 // pred_fallthru
      _
    // Predicated region
    $region10: #{tpu_custom_call.1} parent=1 // pred_check
      _
    $region11: #{tpu_custom_call.1} parent=1 // pred_check_branch
      %16 = sbr.rel (0) target = $region13
    $region12: #{tpu_custom_call.1} parent=1 // pred_region
      _
    $region13: #{tpu_custom_call.1} parent=1 // pred_fallthru
      _
    // Predicated region
    $region14: #{tpu_custom_call.1} parent=1 // pred_check
      _
    $region15: #{tpu_custom_call.1} parent=1 // pred_check_branch
      %18 = sbr.rel (0) target = $region17
    $region16: #{tpu_custom_call.1} parent=1 // pred_region
      _
    $region17: #{tpu_custom_call.1} parent=1 // pred_fallthru
      _
    // Predicated region
    $region18: #{tpu_custom_call.1} parent=1 // pred_check
      _
    $region19: #{tpu_custom_call.1} parent=1 // pred_check_branch
      %20 = sbr.rel (0) target = $region21
    $region20: #{tpu_custom_call.1} parent=1 // pred_region
      _
    $region21: #{tpu_custom_call.1} parent=1 // pred_fallthru
      _
    %v21 = vld [vmem:[%s1] sm:$0xff]
    %v22 = vld [vmem:[%s1 + $0x8] sm:$0xff]
    %v23 = vld [vmem:[%s1 + $0x10] sm:$0xff]
    %v24 = vld [vmem:[%s1 + $0x18] sm:$0xff]
    %v25 = vld [vmem:[%s1 + $0x20] sm:$0xff]
    %v26 = vld [vmem:[%s1 + $0x28] sm:$0xff]
    %v27 = vld [vmem:[%s1 + $0x30] sm:$0xff]
    %v28 = vld [vmem:[%s1 + $0x38] sm:$0xff]
    %v29 = vld [vmem:[%s2] sm:$0xff]
    %v30 = vld [vmem:[%s2 + $0x8] sm:$0xff]
    %v31 = vld [vmem:[%s2 + $0x10] sm:$0xff]
    %v32 = vld [vmem:[%s2 + $0x18] sm:$0xff]
    %v33 = vld [vmem:[%s2 + $0x20] sm:$0xff]
    %v34 = vld [vmem:[%s2 + $0x28] sm:$0xff]
    %v35 = vld [vmem:[%s2 + $0x30] sm:$0xff]
    %v36 = vld [vmem:[%s2 + $0x38] sm:$0xff]
    %vm37 = vcmask 523264
    %v39 = vsel %vm37, %v21, 0
    %v42 = vsel %vm37, %v22, 0
    %v45 = vsel %vm37, %v23, 0
    %v48 = vsel %vm37, %v24, 0
    %v51 = vsel %vm37, %v25, 0
    %v54 = vsel %vm37, %v26, 0
    %v57 = vsel %vm37, %v27, 0
    %v60 = vsel %vm37, %v28, 0
    %62 = vmatpush.msra.mxu0 0.0
    %63 = vmatpush.msra.mxu0 0.0
    %64 = vmatpush.msra.mxu0 0.0
    %65 = vmatpush.msra.mxu0 0.0
    %66 = vmatpush.msra.mxu0 0.0
    %67 = vmatpush.msra.mxu0 0.0
    %68 = vmatpush.msra.mxu0 0.0
    %69 = vmatpush.msra.mxu0 0.0
    %70 = vmatpush.msra.mxu0 %v36
    %71 = vmatpush.msra.mxu0 %v35
    %72 = vmatpush.msra.mxu0 %v34
    %73 = vmatpush.msra.mxu0 %v33
    %74 = vmatpush.msra.mxu0 %v32
    %75 = vmatpush.msra.mxu0 %v31
    %76 = vmatpush.msra.mxu0 %v30
    %77 = vmatpush.msra.mxu0 %v29
    %78 = vmatmul.f32.gmra.mxu0 %v39
    %v79 = vpop.f32.mrf.mxu0
    %v80 = vadd.f32 0.0, %v79
    %81 = vmatmul.f32.gmra.mxu0 %v42
    %v82 = vpop.f32.mrf.mxu0
    %v83 = vadd.f32 0.0, %v82
    %84 = vmatmul.f32.gmra.mxu0 %v45
    %v85 = vpop.f32.mrf.mxu0
    %v86 = vadd.f32 0.0, %v85
    %87 = vmatmul.f32.gmra.mxu0 %v48
    %v88 = vpop.f32.mrf.mxu0
    %v89 = vadd.f32 0.0, %v88
    %90 = vmatmul.f32.gmra.mxu0 %v51
    %v91 = vpop.f32.mrf.mxu0
    %v92 = vadd.f32 0.0, %v91
    %93 = vmatmul.f32.gmra.mxu0 %v54
    %v94 = vpop.f32.mrf.mxu0
    %v95 = vadd.f32 0.0, %v94
    %96 = vmatmul.f32.gmra.mxu0 %v57
    %v97 = vpop.f32.mrf.mxu0
    %v98 = vadd.f32 0.0, %v97
    %99 = vmatmul.f32.gmra.mxu0 %v60
    %v100 = vpop.f32.mrf.mxu0
    %v101 = vadd.f32 0.0, %v100
    %102 = vdwg.mxu0
    %v103 = vld [vmem:[%s0] sm:$0x1]
    %v104 = vld [vmem:[%s0 + $0x1] sm:$0x1]
    %v105 = vld [vmem:[%s0 + $0x2] sm:$0x1]
    %v106 = vld [vmem:[%s0 + $0x3] sm:$0x1]
    %v111 = vperm.slane %v103, 0
    %v112 = vperm.slane %v104, 0
    %v113 = vperm.slane %v105, 0
    %v114 = vperm.slane %v106, 0
    %v119 = vadd.f32 %v80, %v111
    %v120 = vadd.f32 %v83, %v111
    %v121 = vadd.f32 %v86, %v112
    %v122 = vadd.f32 %v89, %v112
    %v123 = vadd.f32 %v92, %v113
    %v124 = vadd.f32 %v95, %v113
    %v125 = vadd.f32 %v98, %v114
    %v126 = vadd.f32 %v101, %v114
    %v127 = vtanh.pop %v119
    %v128 = vtanh.pop %v120
    %v129 = vtanh.pop %v121
    %v130 = vtanh.pop %v122
    %v131 = vtanh.pop %v123
    %v132 = vtanh.pop %v124
    %v133 = vtanh.pop %v125
    %v134 = vtanh.pop %v126
    %v135 = vld [vmem:[%s3] sm:$0x1]
    %v137 = vperm.slane %v135, 0
    %v139 = vmul.f32 %v127, %v137
    %v140 = vmul.f32 %v128, %v137
    %v141 = vmul.f32 %v129, %v137
    %v142 = vmul.f32 %v130, %v137
    %v143 = vmul.f32 %v131, %v137
    %v144 = vmul.f32 %v132, %v137
    %v145 = vmul.f32 %v133, %v137
    %v146 = vmul.f32 %v134, %v137
    %vm147 = vcmask 261120
    %v148 = vsel %vm147, %v139, 0.0
    %149 = vadd.xlane.f32.xlu0 %v148
    %v150 = vpop.xlane.xlu0 %149
    %v151 = vsel %vm147, %v140, 0.0
    %152 = vadd.xlane.f32.xlu0 %v151
    %v153 = vpop.xlane.xlu0 %152
    %v154 = vsel %vm147, %v141, 0.0
    %155 = vadd.xlane.f32.xlu0 %v154
    %v156 = vpop.xlane.xlu0 %155
    %v157 = vsel %vm147, %v142, 0.0
    %158 = vadd.xlane.f32.xlu0 %v157
    %v159 = vpop.xlane.xlu0 %158
    %v160 = vsel %vm147, %v143, 0.0
    %161 = vadd.xlane.f32.xlu0 %v160
    %v162 = vpop.xlane.xlu0 %161
    %v163 = vsel %vm147, %v144, 0.0
    %164 = vadd.xlane.f32.xlu0 %v163
    %v165 = vpop.xlane.xlu0 %164
    %v166 = vsel %vm147, %v145, 0.0
    %167 = vadd.xlane.f32.xlu0 %v166
    %v168 = vpop.xlane.xlu0 %167
    %v169 = vsel %vm147, %v146, 0.0
    %170 = vadd.xlane.f32.xlu0 %v169
    %v171 = vpop.xlane.xlu0 %170
    %v180 = vlaneseq
    %v181 = vand.u32 %v180, 127
    %v182 = vperm.slane %v150, %v181
    %v183 = vadd.s32 %v181, 4294967288
    %v184 = vperm.slane %v153, %v183
    %vm185 = vcmask 130112
    %v186 = vsel %vm185, %v184, %v182
    %v187 = vperm.slane %v156, %v181
    %v188 = vperm.slane %v159, %v183
    %v189 = vsel %vm185, %v188, %v187
    %v190 = vperm.slane %v162, %v181
    %v191 = vperm.slane %v165, %v183
    %v192 = vsel %vm185, %v191, %v190
    %v193 = vperm.slane %v168, %v181
    %v194 = vperm.slane %v171, %v183
    %v195 = vsel %vm185, %v194, %v193
    %vm196 = vcmask 1041409
    %v197 = vsel %vm196, %v189, %v186
    %vm198 = vcmask 1042434
    %v199 = vsel %vm198, %v192, %v197
    %vm200 = vcmask 1043459
    %v201 = vsel %vm200, %v195, %v199
    %vm203 = vcmask 125952
    %204 = vst.msk [vmem:[#allocation2] sm:$0xf] %vm203, %v201
    %v205 = vld [vmem:[#allocation2] sm:$0xf]
    %v206 = vld [vmem:[%s4] sm:$0xf]
    %vm207 = vcmp.eq.s32.totalorder %v206, 0
    %v208 = vsel %vm207, -1e+10, %v205
    %vm209 = vcmp.lt.s32.totalorder %v181, 10
    %v210 = vsel %vm209, %v208, -inf
    %vm211 = vcmask 1043456
    %v212 = vsel %vm211, %v210, -inf
    %213 = vmax.xlane.f32.xlu0 %v212
    %v214 = vpop.xlane.xlu0 %213
    %v215 = vsub.f32 %v210, %v214
    %v216 = vmul.f32 %v215, 1.442695
    %v217 = vpow.pop %v216
    %v218 = vsel %vm211, %v217, 0.0
    %219 = vadd.xlane.f32.xlu0 %v218
    %v220 = vpop.xlane.xlu0 %219
    %v221 = vrcp.pop %v220
    %v222 = vmul.f32 %v220, %v221
    %v223 = vsub.f32 1.0, %v222
    %v224 = vmul.f32 %v221, %v223
    %v225 = vadd.f32 %v221, %v224
    %vm226 = vweird.f32 %v220
    %vm227 = vweird.f32 %v221
    %vm228 = vmor %vm226, %vm227
    %v229 = vsel %vm228, %v221, %v225
    %v230 = vand.u32 2147483647, %v220
    %vm231 = vcmp.eq.f32.partialorder %v230, 8.507059e+37
    %v232 = vand.u32 %v220, 2147483648
    %v233 = vor.u32 1.1754944e-38, %v232
    %v234 = vsel %vm231, %v233, %v229
    %v235 = vmul.f32 %v217, %v234
    %236 = vst [vmem:[#allocation3] sm:$0xf] %v235
    // Predicated region
    $region22: #{tpu_custom_call.1} parent=1 // pred_check
      _
    $region23: #{tpu_custom_call.1} parent=1 // pred_check_branch
      %238 = sbr.rel (0) target = $region25
    $region24: #{tpu_custom_call.1} parent=1 // pred_region
      %240 = vsyncadd [#allocation4], 0
      %s242 = sshll.u32 [#allocation3], 4
      %s243 = int_to_ptr.vmem [resolvable:$true] %s242
      %s244 = sshll.u32 %s5, 4
      %s245 = int_to_ptr.hbm [resolvable:$true] %s244
      %247 = dma.vmem_to_hbm [thread:$0]  %s243, 64, %s245, [#allocation4]
    $region25: #{tpu_custom_call.1} parent=1 // pred_fallthru
      _
    // Predicated region
    $region26: #{tpu_custom_call.1} parent=1 // pred_check
      _
    $region27: #{tpu_custom_call.1} parent=1 // pred_check_branch
      %249 = sbr.rel (0) target = $region29
    $region28: #{tpu_custom_call.1} parent=1 // pred_region
      %251 = dma.done [#allocation4], 64
    $region29: #{tpu_custom_call.1} parent=1 // pred_fallthru
      _
    %252 = vsyncpa [#allocation4], 1

</llo_original>
